<compile_context>
chip_gen: v5e
topology: v5e:2x2
jax: 0.10.0
libtpu: 0.0.40
codegen_flags: <defaults>
</compile_context>

<pallas_src>
import functools

import jax
import jax.numpy as jnp
from jax.experimental import pallas as pl
from jax.experimental.pallas import tpu as pltpu


def lucas_kan_kernel(x_ref, w_ref, b_ref, o_ref):
    """One row-tile of the Lucas-KAN layer.

    x_ref: (tm, Dp)            input tile (Dp = d_in padded to a 128 multiple)
    w_ref: (deg * Dp, Dop)     fused weights for degrees 1..deg (2D matmul operand)
    b_ref: (1, Dop)            bias = 2 * sum_i C[i, :, 0]  (the L_0 term)
    o_ref: (tm, Dop)           output tile
    """
    d_in = x_ref.shape[1]
    n_terms = w_ref.shape[0] // d_in            # number of non-constant terms (= degree)

    # Keep VPU/EUP math in f32 (v5e has no bf16 VPU/EUP; kernel is mem-bound anyway).
    t = jnp.tanh(x_ref[...].astype(jnp.float32))

    # Lucas recurrence; L_0 = 2 is folded into the bias, so start from L_1 = t.
    terms = [t]                                 # L_1
    l_prev, l_cur = 2.0, t
    for _ in range(n_terms - 1):
        l_prev, l_cur = l_cur, t * l_cur + l_prev
        terms.append(l_cur)                     # L_2, L_3, ...

    # One fused MXU matmul with K = n_terms * Dp (lane-aligned concat).
    l_cat = terms[0] if n_terms == 1 else jnp.concatenate(terms, axis=-1)
    acc = jnp.dot(l_cat, w_ref[...], preferred_element_type=jnp.float32)

    o_ref[...] = (acc + b_ref[...]).astype(o_ref.dtype)


def _round_up(x, m):
    return ((x + m - 1) // m) * m


@functools.partial(jax.jit, static_argnames=("tm",))
def temporal_kan(x, coeffs, *, tm=512):
    """Apply the Temporal_KAN (single LucasKAN layer) forward pass.

    x:      (..., dim)
    coeffs: (dim, dim, degree+1)   -- PyTorch param layout (input, output, degree+1)
    returns (prod(leading dims), dim)  -- matches PyTorch's `y.view(-1, outdim)`
    """
    d_in, d_out, deg1 = coeffs.shape
    assert x.shape[-1] == d_in
    assert deg1 >= 2, "degree must be >= 1"

    x_flat = x.reshape(-1, d_in)
    n = x_flat.shape[0]

    itemsize = jnp.dtype(x.dtype).itemsize
    sub = {4: 8, 2: 16, 1: 32}.get(itemsize, 8)     # sublane multiple for the dtype

    # Pad feature dims to lane multiples so every tile is lane-dense.
    d_in_p = _round_up(d_in, 128)
    d_out_p = _round_up(d_out, 128)

    cf = coeffs.astype(jnp.float32)

    # Fold the constant L_0 = 2 term into a bias: bias[o] = 2 * sum_i C[i, o, 0].
    bias = 2.0 * jnp.sum(cf[:, :, 0], axis=0)                       # (d_out,)
    bias = jnp.pad(bias, (0, d_out_p - d_out)).reshape(1, d_out_p)  # (1, Dop)

    # Degrees 1..deg as a single 2D matmul operand: (deg, Dp, Dop) -> (deg*Dp, Dop).
    deg = deg1 - 1
    w = jnp.transpose(cf[:, :, 1:], (2, 0, 1))                      # (deg, d_in, d_out)
    w = jnp.pad(w, ((0, 0), (0, d_in_p - d_in), (0, d_out_p - d_out)))
    w2d = w.reshape(deg * d_in_p, d_out_p)

    # Row tile: large (HBM-bandwidth bound, per-grid-step overhead ~0.35us), but
    #  - clamped to the (padded) row count for tiny inputs,
    #  - capped so double-buffered in/out tiles stay well inside scoped VMEM
    #    (important on v7x where physical VMEM is 64 MiB).
    tm_eff = max(sub, min(tm, _round_up(n, sub)))
    while tm_eff > sub and 4 * tm_eff * (d_in_p + d_out_p) * 4 > (12 << 20):
        tm_eff //= 2
    tm_eff = max(sub, _round_up(tm_eff, sub))

    n_pad = _round_up(max(n, 1), tm_eff)

    x_pad = x_flat
    if (n_pad != n) or (d_in_p != d_in):
        x_pad = jnp.pad(x_flat, ((0, n_pad - n), (0, d_in_p - d_in)))

    grid = (n_pad // tm_eff,)

    cost = pl.CostEstimate(
        flops=2 * n_pad * (deg * d_in_p) * d_out_p,
        transcendentals=n_pad * d_in_p,
        bytes_accessed=(n_pad * d_in_p + n_pad * d_out_p) * itemsize + w2d.size * 4,
    )

    out_pad = pl.pallas_call(
        lucas_kan_kernel,
        out_shape=jax.ShapeDtypeStruct((n_pad, d_out_p), x.dtype),
        grid_spec=pltpu.PrefetchScalarGridSpec(
            num_scalar_prefetch=0,
            grid=grid,
            in_specs=[
                pl.BlockSpec((tm_eff, d_in_p), lambda i: (i, 0)),       # x row tile
                pl.BlockSpec((deg * d_in_p, d_out_p), lambda i: (0, 0)),  # fused weights
                pl.BlockSpec((1, d_out_p), lambda i: (0, 0)),           # L0 bias
            ],
            out_specs=pl.BlockSpec((tm_eff, d_out_p), lambda i: (i, 0)),
        ),
        compiler_params=pltpu.CompilerParams(
            dimension_semantics=("parallel",),      # shards the row axis across TCs (v7x)
            vmem_limit_bytes=32 * 1024 * 1024,
        ),
        cost_estimate=cost,
    )(x_pad, w2d, bias)

    return out_pad[:n, :d_out]


def temporal_kan_reference(x, coeffs):
    """Pure-JAX reference mirroring the PyTorch LucasKANLayer forward."""
    d_in, _, deg1 = coeffs.shape
    xf = x.reshape(-1, d_in).astype(jnp.float32)
    t = jnp.tanh(xf)
    polys = [jnp.full_like(t, 2.0)]                    # L_0 = 2
    if deg1 > 1:
        polys.append(t)                                # L_1 = t
    for _ in range(2, deg1):
        polys.append(t * polys[-1] + polys[-2])        # L_n = t*L_{n-1} + L_{n-2}
    lucas = jnp.stack(polys, axis=-1)                  # (N, D_in, deg+1)
    y = jnp.einsum("bid,iod->bo", lucas, coeffs.astype(jnp.float32))
    return y.astype(x.dtype)


if __name__ == "__main__":
    batch, seq, dim = 2, 8, 16          # small shapes; dim is the KAN in/out width
    degree = 3

    key = jax.random.PRNGKey(0)
    k_x, k_w = jax.random.split(key)

    # Input: (batch, seq, dim) float32.
    x = jax.random.normal(k_x, (batch, seq, dim), dtype=jnp.float32)

    # Deterministic parameter init matching nn.init.normal_(mean=0, std=1/(in*(deg+1))).
    std = 1.0 / (dim * (degree + 1))
    coeffs = std * jax.random.normal(k_w, (dim, dim, degree + 1), dtype=jnp.float32)

    out = temporal_kan(x, coeffs)
    out = jax.block_until_ready(out)

    ref = temporal_kan_reference(x, coeffs)
    assert out.shape == (batch * seq, dim)
    assert jnp.allclose(out, ref, atol=1e-4, rtol=1e-4)

    print("KERNEL_OK")
</pallas_src>

<mosaic_0001>
module attributes {stable_mosaic.version = 11 : i64} {
  func.func @lucas_kan_kernel(%arg0: i32, %arg1: memref<16x128xf32, #tpu.memory_space<vmem>>, %arg2: memref<384x128xf32, #tpu.memory_space<vmem>>, %arg3: memref<1x128xf32, #tpu.memory_space<vmem>>, %arg4: memref<16x128xf32, #tpu.memory_space<vmem>>) attributes {dimension_semantics = [#tpu.dimension_semantics<parallel>], iteration_bounds = array<i64: 1>, scalar_prefetch = 0 : i64, scratch_operands = 0 : i64, tpu.core_type = #tpu.core_type<tc>, window_params = [{transform_indices = @transform_0, window_bounds = array<i64: 16, 128>}, {pipeline_mode = #tpu.pipeline_mode<synchronous>, transform_indices = @transform_1, window_bounds = array<i64: 384, 128>}, {pipeline_mode = #tpu.pipeline_mode<synchronous>, transform_indices = @transform_2, window_bounds = array<i64: 1, 128>}, {transform_indices = @transform_3, window_bounds = array<i64: 16, 128>}]} {
    %c0 = arith.constant 0 : index
    %c0_0 = arith.constant 0 : index
    %0 = vector.load %arg1[%c0, %c0_0] : memref<16x128xf32, #tpu.memory_space<vmem>>, vector<16x128xf32>
    %1 = math.tanh %0 : vector<16x128xf32>
    %2 = arith.mulf %1, %1 : vector<16x128xf32>
    %cst = arith.constant 2.000000e+00 : f32
    %3 = vector.broadcast %cst : f32 to vector<16x128xf32>
    %4 = arith.addf %2, %3 : vector<16x128xf32>
    %5 = arith.mulf %1, %4 : vector<16x128xf32>
    %6 = arith.addf %5, %1 : vector<16x128xf32>
    %7 = tpu.concatenate %1, %4, %6 in 1 : vector<16x128xf32>, vector<16x128xf32>, vector<16x128xf32> -> vector<16x384xf32>
    %c0_1 = arith.constant 0 : index
    %c0_2 = arith.constant 0 : index
    %8 = vector.load %arg2[%c0_1, %c0_2] : memref<384x128xf32, #tpu.memory_space<vmem>>, vector<384x128xf32>
    %cst_3 = arith.constant dense<0.000000e+00> : vector<16x128xf32>
    %9 = tpu.matmul %7, %8, %cst_3 {dimension_numbers = #tpu.dot_dimension_numbers<[1], [0], [0], [1], [0, 0, 1, 1], [], []>} : vector<16x384xf32>, vector<384x128xf32>, vector<16x128xf32> -> vector<16x128xf32>
    %c0_4 = arith.constant 0 : index
    %c0_5 = arith.constant 0 : index
    %10 = vector.load %arg3[%c0_4, %c0_5] : memref<1x128xf32, #tpu.memory_space<vmem>>, vector<1x128xf32>
    %11 = vector.broadcast %10 : vector<1x128xf32> to vector<16x128xf32>
    %12 = arith.addf %9, %11 : vector<16x128xf32>
    %c0_6 = arith.constant 0 : index
    %c0_7 = arith.constant 0 : index
    %13 = vector.load %arg4[%c0_6, %c0_7] : memref<16x128xf32, #tpu.memory_space<vmem>>, vector<16x128xf32>
    tpu.vector_store %arg4[%c0_6, %c0_7], %12 {strides = array<i32>} : memref<16x128xf32, #tpu.memory_space<vmem>>, vector<16x128xf32>,
    return
  }
  func.func @transform_0(%arg0: i32) -> (i32, i32) {
    %c0_i32 = arith.constant 0 : i32
    %c0_i32_0 = arith.constant 0 : i32
    return %arg0, %c0_i32 : i32, i32
  }
  func.func @transform_1(%arg0: i32) -> (i32, i32) {
    %c0_i32 = arith.constant 0 : i32
    %c0_i32_0 = arith.constant 0 : i32
    %c0_i32_1 = arith.constant 0 : i32
    return %c0_i32, %c0_i32_0 : i32, i32
  }
  func.func @transform_2(%arg0: i32) -> (i32, i32) {
    %c0_i32 = arith.constant 0 : i32
    %c0_i32_0 = arith.constant 0 : i32
    %c0_i32_1 = arith.constant 0 : i32
    return %c0_i32, %c0_i32_0 : i32, i32
  }
  func.func @transform_3(%arg0: i32) -> (i32, i32) {
    %c0_i32 = arith.constant 0 : i32
    %c0_i32_0 = arith.constant 0 : i32
    return %arg0, %c0_i32 : i32, i32
  }
}

</mosaic_0001>

<llo_original>
// kernel: temporal_kan.1
$region0: #{temporal_kan.1}
  #allocation0 [shape = 'u32[]', space=smem, size = 0x4, offset = 0x4, fixed_abs, tag = 'smem constant byte address 0x4 - core index']
  #allocation1 [shape = 'u32[72,128]{1,0:T(1,128)}', space=vmem, size = 0x9000, scoped, tag = 'internal scratch']
  %s0 = inlined_call_operand.vmem [shape: f32[16,128], index: 0, kind: input, shape index: {}]
  %s1 = inlined_call_operand.vmem [shape: f32[384,128], index: 1, kind: input, shape index: {}]
  %s2 = inlined_call_operand.vmem [shape: f32[1,128], index: 2, kind: input, shape index: {}]
  %s3 = inlined_call_operand.hbm [shape: f32[16,128], index: 3, kind: output, shape index: {}]
  %s4 = sld [smem:[#allocation0]]
  $region22: #{temporal_kan.1} parent=0
    _
  %s6 = ssub.s32 1, %s4
  %s7 = scalar_select 0, %s6, %s4
  $region1: #{temporal_kan.1} parent=0
    #allocation2 [shape = 'u8[8192]{0}', space=vmem, size = 0x2000, scoped, tag = 'output window, operand 0, single buffered']
    #allocation3 [shape = 's32[1]{0}', space=sflag, size = 0x4, scoped, tag = 'scoped memory for temporal_kan.1']
    %8 = vsyncpa [#allocation3], 0
    // Predicated region
    $region2: #{temporal_kan.1} parent=1 // pred_check
      _
    $region3: #{temporal_kan.1} parent=1 // pred_check_branch
      %10 = sbr.rel (0) target = $region5
    $region4: #{temporal_kan.1} parent=1 // pred_region
      _
    $region5: #{temporal_kan.1} parent=1 // pred_fallthru
      _
    // Predicated region
    $region6: #{temporal_kan.1} parent=1 // pred_check
      _
    $region7: #{temporal_kan.1} parent=1 // pred_check_branch
      %12 = sbr.rel (0) target = $region9
    $region8: #{temporal_kan.1} parent=1 // pred_region
      _
    $region9: #{temporal_kan.1} parent=1 // pred_fallthru
      _
    // Predicated region
    $region10: #{temporal_kan.1} parent=1 // pred_check
      _
    $region11: #{temporal_kan.1} parent=1 // pred_check_branch
      %14 = sbr.rel (0) target = $region13
    $region12: #{temporal_kan.1} parent=1 // pred_region
      _
    $region13: #{temporal_kan.1} parent=1 // pred_fallthru
      _
    %v15 = vld [vmem:[%s0] sm:$0xff]
    %v16 = vld [vmem:[%s0 + $0x8] sm:$0xff]
    %v17 = vtanh.pop %v15
    %v18 = vtanh.pop %v16
    %v19 = vmul.f32 %v17, %v17
    %v20 = vmul.f32 %v18, %v18
    %v21 = vadd.f32 %v19, 2.0
    %v22 = vadd.f32 %v20, 2.0
    %v23 = vmul.f32 %v17, %v21
    %v24 = vmul.f32 %v18, %v22
    %v25 = vadd.f32 %v23, %v17
    %v26 = vadd.f32 %v24, %v18
    %v27 = vld [vmem:[%s1] sm:$0xff]
    %v28 = vld [vmem:[%s1 + $0x8] sm:$0xff]
    %v29 = vld [vmem:[%s1 + $0x10] sm:$0xff]
    %v30 = vld [vmem:[%s1 + $0x18] sm:$0xff]
    %v31 = vld [vmem:[%s1 + $0x20] sm:$0xff]
    %v32 = vld [vmem:[%s1 + $0x28] sm:$0xff]
    %v33 = vld [vmem:[%s1 + $0x30] sm:$0xff]
    %v34 = vld [vmem:[%s1 + $0x38] sm:$0xff]
    %v35 = vld [vmem:[%s1 + $0x40] sm:$0xff]
    %v36 = vld [vmem:[%s1 + $0x48] sm:$0xff]
    %v37 = vld [vmem:[%s1 + $0x50] sm:$0xff]
    %v38 = vld [vmem:[%s1 + $0x58] sm:$0xff]
    %v39 = vld [vmem:[%s1 + $0x60] sm:$0xff]
    %v40 = vld [vmem:[%s1 + $0x68] sm:$0xff]
    %v41 = vld [vmem:[%s1 + $0x70] sm:$0xff]
    %v42 = vld [vmem:[%s1 + $0x78] sm:$0xff]
    %v43 = vld [vmem:[%s1 + $0x80] sm:$0xff]
    %v44 = vld [vmem:[%s1 + $0x88] sm:$0xff]
    %v45 = vld [vmem:[%s1 + $0x90] sm:$0xff]
    %v46 = vld [vmem:[%s1 + $0x98] sm:$0xff]
    %v47 = vld [vmem:[%s1 + $0xa0] sm:$0xff]
    %v48 = vld [vmem:[%s1 + $0xa8] sm:$0xff]
    %v49 = vld [vmem:[%s1 + $0xb0] sm:$0xff]
    %v50 = vld [vmem:[%s1 + $0xb8] sm:$0xff]
    %v51 = vld [vmem:[%s1 + $0xc0] sm:$0xff]
    %v52 = vld [vmem:[%s1 + $0xc8] sm:$0xff]
    %v53 = vld [vmem:[%s1 + $0xd0] sm:$0xff]
    %v54 = vld [vmem:[%s1 + $0xd8] sm:$0xff]
    %v55 = vld [vmem:[%s1 + $0xe0] sm:$0xff]
    %v56 = vld [vmem:[%s1 + $0xe8] sm:$0xff]
    %v57 = vld [vmem:[%s1 + $0xf0] sm:$0xff]
    %v58 = vld [vmem:[%s1 + $0xf8] sm:$0xff]
    %v59 = vld [vmem:[%s1 + $0x100] sm:$0xff]
    %v60 = vld [vmem:[%s1 + $0x108] sm:$0xff]
    %v61 = vld [vmem:[%s1 + $0x110] sm:$0xff]
    %v62 = vld [vmem:[%s1 + $0x118] sm:$0xff]
    %v63 = vld [vmem:[%s1 + $0x120] sm:$0xff]
    %v64 = vld [vmem:[%s1 + $0x128] sm:$0xff]
    %v65 = vld [vmem:[%s1 + $0x130] sm:$0xff]
    %v66 = vld [vmem:[%s1 + $0x138] sm:$0xff]
    %v67 = vld [vmem:[%s1 + $0x140] sm:$0xff]
    %v68 = vld [vmem:[%s1 + $0x148] sm:$0xff]
    %v69 = vld [vmem:[%s1 + $0x150] sm:$0xff]
    %v70 = vld [vmem:[%s1 + $0x158] sm:$0xff]
    %v71 = vld [vmem:[%s1 + $0x160] sm:$0xff]
    %v72 = vld [vmem:[%s1 + $0x168] sm:$0xff]
    %v73 = vld [vmem:[%s1 + $0x170] sm:$0xff]
    %v74 = vld [vmem:[%s1 + $0x178] sm:$0xff]
    %v75 = vld [vmem:[%s2] sm:$0x1]
    %v77 = vperm.slane %v75, 0
    %79 = vmatpush.msra.mxu0 %v42
    %80 = vmatpush.msra.mxu0 %v41
    %81 = vmatpush.msra.mxu0 %v40
    %82 = vmatpush.msra.mxu0 %v39
    %83 = vmatpush.msra.mxu0 %v38
    %84 = vmatpush.msra.mxu0 %v37
    %85 = vmatpush.msra.mxu0 %v36
    %86 = vmatpush.msra.mxu0 %v35
    %87 = vmatpush.msra.mxu0 %v34
    %88 = vmatpush.msra.mxu0 %v33
    %89 = vmatpush.msra.mxu0 %v32
    %90 = vmatpush.msra.mxu0 %v31
    %91 = vmatpush.msra.mxu0 %v30
    %92 = vmatpush.msra.mxu0 %v29
    %93 = vmatpush.msra.mxu0 %v28
    %94 = vmatpush.msra.mxu0 %v27
    %95 = vmatmul.f32.gmra.mxu0 %v17
    %v96 = vpop.f32.mrf.mxu0
    %v97 = vadd.f32 %v77, %v96
    %98 = vmatmul.f32.gmra.mxu0 %v18
    %v99 = vpop.f32.mrf.mxu0
    %v100 = vadd.f32 %v77, %v99
    %101 = vdwg.mxu0
    %102 = vmatpush.msra.mxu0 %v58
    %103 = vmatpush.msra.mxu0 %v57
    %104 = vmatpush.msra.mxu0 %v56
    %105 = vmatpush.msra.mxu0 %v55
    %106 = vmatpush.msra.mxu0 %v54
    %107 = vmatpush.msra.mxu0 %v53
    %108 = vmatpush.msra.mxu0 %v52
    %109 = vmatpush.msra.mxu0 %v51
    %110 = vmatpush.msra.mxu0 %v50
    %111 = vmatpush.msra.mxu0 %v49
    %112 = vmatpush.msra.mxu0 %v48
    %113 = vmatpush.msra.mxu0 %v47
    %114 = vmatpush.msra.mxu0 %v46
    %115 = vmatpush.msra.mxu0 %v45
    %116 = vmatpush.msra.mxu0 %v44
    %117 = vmatpush.msra.mxu0 %v43
    %118 = vmatmul.f32.gmra.mxu0 %v21
    %v119 = vpop.f32.mrf.mxu0
    %v120 = vadd.f32 %v97, %v119
    %121 = vmatmul.f32.gmra.mxu0 %v22
    %v122 = vpop.f32.mrf.mxu0
    %v123 = vadd.f32 %v100, %v122
    %124 = vdwg.mxu0
    %125 = vmatpush.msra.mxu0 %v74
    %126 = vmatpush.msra.mxu0 %v73
    %127 = vmatpush.msra.mxu0 %v72
    %128 = vmatpush.msra.mxu0 %v71
    %129 = vmatpush.msra.mxu0 %v70
    %130 = vmatpush.msra.mxu0 %v69
    %131 = vmatpush.msra.mxu0 %v68
    %132 = vmatpush.msra.mxu0 %v67
    %133 = vmatpush.msra.mxu0 %v66
    %134 = vmatpush.msra.mxu0 %v65
    %135 = vmatpush.msra.mxu0 %v64
    %136 = vmatpush.msra.mxu0 %v63
    %137 = vmatpush.msra.mxu0 %v62
    %138 = vmatpush.msra.mxu0 %v61
    %139 = vmatpush.msra.mxu0 %v60
    %140 = vmatpush.msra.mxu0 %v59
    %141 = vmatmul.f32.gmra.mxu0 %v25
    %v142 = vpop.f32.mrf.mxu0
    %v143 = vadd.f32 %v120, %v142
    %144 = vmatmul.f32.gmra.mxu0 %v26
    %v145 = vpop.f32.mrf.mxu0
    %v146 = vadd.f32 %v123, %v145
    %147 = vdwg.mxu0
    %148 = vst [vmem:[#allocation2] sm:$0xff] %v143
    %149 = vst [vmem:[#allocation2 + $0x8] sm:$0xff] %v146
    // Predicated region
    $region14: #{temporal_kan.1} parent=1 // pred_check
      _
    $region15: #{temporal_kan.1} parent=1 // pred_check_branch
      %151 = sbr.rel (0) target = $region17
    $region16: #{temporal_kan.1} parent=1 // pred_region
      %153 = vsyncadd [#allocation3], 0
      %s154 = sshll.u32 [#allocation2], 4
      %s155 = int_to_ptr.vmem [resolvable:$true] %s154
      %s156 = sshll.u32 %s3, 4
      %s157 = int_to_ptr.hbm [resolvable:$true] %s156
      %162 = dma.vmem_to_hbm [thread:$0]  %s155, 256, %s157, [#allocation3], 128, 128, 8
    $region17: #{temporal_kan.1} parent=1 // pred_fallthru
      _
    // Predicated region
    $region18: #{temporal_kan.1} parent=1 // pred_check
      _
    $region19: #{temporal_kan.1} parent=1 // pred_check_branch
      %164 = sbr.rel (0) target = $region21
    $region20: #{temporal_kan.1} parent=1 // pred_region
      %166 = dma.done [#allocation3], 256
    $region21: #{temporal_kan.1} parent=1 // pred_fallthru
      _
    %167 = vsyncpa [#allocation3], 1

</llo_original>
